<compile_context>
chip_gen: v7x
topology: tpu7x:2x2x1
jax: 0.10.0
libtpu: 0.0.40
codegen_flags: <defaults>
</compile_context>

<pallas_src>
import functools

import jax
import jax.numpy as jnp
from jax.experimental import pallas as pl
from jax.experimental.pallas import tpu as pltpu


# ----------------------------------------------------------------------------
# Generation-aware VMEM limit (v5e/v6e: 128 MiB per TC, v7x: 64 MiB per TC).
# ----------------------------------------------------------------------------
try:
    _VMEM_LIMIT = max(
        32 * 1024 * 1024,
        int(pltpu.get_tpu_info().vmem_capacity_bytes) * 3 // 4,  # ~25% headroom
    )
except Exception:  # pragma: no cover - conservative fallback (fits v7x too)
    _VMEM_LIMIT = 48 * 1024 * 1024


def _mosaic_params_1d():
    return pltpu.CompilerParams(
        dimension_semantics=("parallel",),
        vmem_limit_bytes=_VMEM_LIMIT,
    )


_MM_TILE_M = 128   # matmul row tile (MXU-aligned)
_ROW_TILE = 512    # row tile for elementwise / pooling kernels


# ----------------------------------------------------------------------------
# Pallas kernels
# ----------------------------------------------------------------------------
def _mm_bias_kernel(a_ref, b_ref, bias_ref, o_ref, *, relu):
    """o = act(a @ b + bias); bf16 operands, f32 accumulate, bias broadcast over rows."""
    acc = jnp.dot(a_ref[...], b_ref[...], preferred_element_type=jnp.float32)
    y = acc + bias_ref[...]
    if relu:
        y = jnp.maximum(y, 0.0)
    o_ref[...] = y.astype(o_ref.dtype)


def _add_relu_kernel(a_ref, b_ref, o_ref):
    y = a_ref[...].astype(jnp.float32) + b_ref[...].astype(jnp.float32)
    o_ref[...] = jnp.maximum(y, 0.0).astype(o_ref.dtype)


def _max_reduce_kernel(x_ref, o_ref):
    # x: [9, M_tile, C]  ->  o: [M_tile, C]   (3x3 max-pool window reduction)
    o_ref[...] = jnp.max(x_ref[...], axis=0)


def _mean_kernel(x_ref, o_ref):
    # x: [N, HW, C] -> o: [N, C]   (adaptive avg-pool to 1x1 + flatten), f32 out
    o_ref[...] = jnp.mean(x_ref[...].astype(jnp.float32), axis=1)


# ----------------------------------------------------------------------------
# Wrappers
# ----------------------------------------------------------------------------
def matmul_bias_act(a_bf16, b_bf16, bias_f32, relu, out_dtype):
    """Pallas tiled matmul with fused bias (+ReLU) epilogue.

    128-row (MXU-aligned) M tiles; B and bias stay resident as single blocks
    (K <= 4608, N <= 512 for ResNet-18 so a full K x N bf16 block is <= 4.7 MB
    and easily fits VMEM on every generation).  The remainder M tile is handled
    by the masked tail block of the pl.cdiv grid — no HBM pad/slice copies.
    """
    M, K = a_bf16.shape
    _, N = b_bf16.shape
    tm = M if M < _MM_TILE_M else _MM_TILE_M
    grid = (pl.cdiv(M, tm),)
    return pl.pallas_call(
        functools.partial(_mm_bias_kernel, relu=relu),
        out_shape=jax.ShapeDtypeStruct((M, N), out_dtype),
        grid=grid,
        in_specs=[
            pl.BlockSpec((tm, K), lambda i: (i, 0)),
            pl.BlockSpec((K, N), lambda i: (0, 0)),
            pl.BlockSpec((1, N), lambda i: (0, 0)),
        ],
        out_specs=pl.BlockSpec((tm, N), lambda i: (i, 0)),
        compiler_params=_mosaic_params_1d(),
    )(a_bf16, b_bf16, bias_f32)


def conv2d_bn(x_nhwc, w_oihw, bn_scale, bn_bias, stride, pad, relu,
              out_dtype=jnp.bfloat16):
    """conv (im2col) + frozen-BN affine + optional ReLU; matmul+bias+ReLU in Pallas.

    The BN scale is folded into the weight matrix once per layer (XLA side);
    only the bias survives into the kernel epilogue.
    """
    N, H, W, C = x_nhwc.shape
    OC, IC, KH, KW = w_oihw.shape
    OH = (H + 2 * pad - KH) // stride + 1
    OW = (W + 2 * pad - KW) // stride + 1
    xp = jnp.pad(x_nhwc, ((0, 0), (pad, pad), (pad, pad), (0, 0)))
    # TODO(synk): fuse the im2col into the matmul kernel (per-tap K-accumulation
    # grid axis reading the padded NHWC input directly) to avoid materializing
    # the KH*KW-times-duplicated patch tensor in HBM at large resolutions.
    cols = []
    for dy in range(KH):
        for dx in range(KW):
            cols.append(
                jax.lax.slice(
                    xp,
                    (0, dy, dx, 0),
                    (N, dy + stride * (OH - 1) + 1, dx + stride * (OW - 1) + 1, C),
                    (1, stride, stride, 1),
                )
            )
    # [N, OH, OW, KH*KW, C] -> [N*OH*OW, KH*KW*C]   (bf16 halves the HBM bytes)
    a = jnp.stack(cols, axis=3).reshape(N * OH * OW, KH * KW * C)
    a = a.astype(jnp.bfloat16)
    # Fold frozen-BN per-channel scale into the weights, then
    # [OC, IC, KH, KW] -> [KH, KW, IC, OC] -> [KH*KW*IC, OC]  (matches `a` order)
    w_scaled = w_oihw * bn_scale[:, None, None, None]
    b = jnp.transpose(w_scaled, (2, 3, 1, 0)).reshape(KH * KW * IC, OC)
    b = b.astype(jnp.bfloat16)
    bias = bn_bias.reshape(1, OC).astype(jnp.float32)
    out = matmul_bias_act(a, b, bias, relu, out_dtype)
    return out.reshape(N, OH, OW, OC)


def maxpool_3x3_s2(x_nhwc):
    N, H, W, C = x_nhwc.shape
    k, s, pad = 3, 2, 1
    OH = (H + 2 * pad - k) // s + 1
    OW = (W + 2 * pad - k) // s + 1
    xp = jnp.pad(
        x_nhwc, ((0, 0), (pad, pad), (pad, pad), (0, 0)), constant_values=-jnp.inf
    )
    patches = []
    for dy in range(k):
        for dx in range(k):
            patches.append(
                jax.lax.slice(
                    xp,
                    (0, dy, dx, 0),
                    (N, dy + s * (OH - 1) + 1, dx + s * (OW - 1) + 1, C),
                    (1, s, s, 1),
                )
            )
    M = N * OH * OW
    stk = jnp.stack(patches, axis=0).reshape(k * k, M, C)
    tm = M if M < _ROW_TILE else _ROW_TILE
    out = pl.pallas_call(
        _max_reduce_kernel,
        out_shape=jax.ShapeDtypeStruct((M, C), x_nhwc.dtype),
        grid=(pl.cdiv(M, tm),),
        in_specs=[pl.BlockSpec((k * k, tm, C), lambda i: (0, i, 0))],
        out_specs=pl.BlockSpec((tm, C), lambda i: (i, 0)),
        compiler_params=_mosaic_params_1d(),
    )(stk)
    return out.reshape(N, OH, OW, C)


def add_relu(a_nhwc, b_nhwc):
    N, H, W, C = a_nhwc.shape
    M = N * H * W
    tm = M if M < _ROW_TILE else _ROW_TILE
    out = pl.pallas_call(
        _add_relu_kernel,
        out_shape=jax.ShapeDtypeStruct((M, C), a_nhwc.dtype),
        grid=(pl.cdiv(M, tm),),
        in_specs=[
            pl.BlockSpec((tm, C), lambda i: (i, 0)),
            pl.BlockSpec((tm, C), lambda i: (i, 0)),
        ],
        out_specs=pl.BlockSpec((tm, C), lambda i: (i, 0)),
        compiler_params=_mosaic_params_1d(),
    )(a_nhwc.reshape(M, C), b_nhwc.reshape(M, C))
    return out.reshape(N, H, W, C)


def global_avg_pool(x_nhwc):
    # Final feature map is tiny at any realistic resolution (<= 7x7x512 per
    # image), so a single-block kernel is sufficient; reduce in f32.
    N, H, W, C = x_nhwc.shape
    return pl.pallas_call(
        _mean_kernel,
        out_shape=jax.ShapeDtypeStruct((N, C), jnp.float32),
    )(x_nhwc.reshape(N, H * W, C))


# ----------------------------------------------------------------------------
# Deterministic synthetic parameters (resnet18, nc input channels)
# ----------------------------------------------------------------------------
_BN_EPS = 1e-5


def _conv_w(key, oc, ic, kh, kw):
    fan_in = ic * kh * kw
    return jax.random.normal(key, (oc, ic, kh, kw), jnp.float32) * (2.0 / fan_in) ** 0.5


def _bn_affine(key, c):
    """Frozen BatchNorm (eval mode) folded into per-channel scale/bias."""
    k1, k2, k3, k4 = jax.random.split(key, 4)
    gamma = 1.0 + 0.1 * jax.random.normal(k1, (c,), jnp.float32)
    beta = 0.1 * jax.random.normal(k2, (c,), jnp.float32)
    running_mean = 0.1 * jax.random.normal(k3, (c,), jnp.float32)
    running_var = 1.0 + 0.1 * jax.random.uniform(k4, (c,), jnp.float32)
    scale = gamma / jnp.sqrt(running_var + _BN_EPS)
    bias = beta - running_mean * scale
    return scale, bias


def make_resnet18_params(key, nc):
    keys = iter(jax.random.split(key, 128))
    params = {}
    # conv1: build a 3-channel weight, then replicate channel i -> i % 3
    # (reproduces the DomainBed `nc != 3` surgery on conv1).
    tmp = _conv_w(next(keys), 64, 3, 7, 7)
    params["conv1_w"] = tmp[:, jnp.arange(nc) % 3, :, :]
    params["bn1"] = _bn_affine(next(keys), 64)

    layers = []
    in_c = 64
    for out_c, n_blocks, first_stride in [(64, 2, 1), (128, 2, 2), (256, 2, 2), (512, 2, 2)]:
        blocks = []
        for b in range(n_blocks):
            s = first_stride if b == 0 else 1
            blk = {
                "stride": s,
                "conv1_w": _conv_w(next(keys), out_c, in_c, 3, 3),
                "bn1": _bn_affine(next(keys), out_c),
                "conv2_w": _conv_w(next(keys), out_c, out_c, 3, 3),
                "bn2": _bn_affine(next(keys), out_c),
            }
            if s != 1 or in_c != out_c:
                blk["down_w"] = _conv_w(next(keys), out_c, in_c, 1, 1)
                blk["down_bn"] = _bn_affine(next(keys), out_c)
            blocks.append(blk)
            in_c = out_c
        layers.append(blocks)
    params["layers"] = layers
    return params


# ----------------------------------------------------------------------------
# Forward pass (ResNet-18, fc replaced by Identity, BN frozen, dropout p=0)
# ----------------------------------------------------------------------------
def resnet_forward(x_nchw, params):
    # NCHW -> NHWC; activations flow in bf16 (MXU fast path, half HBM traffic),
    # all accumulations / epilogues in f32, features returned in f32.
    x = jnp.transpose(x_nchw, (0, 2, 3, 1)).astype(jnp.bfloat16)

    # stem
    s, b = params["bn1"]
    x = conv2d_bn(x, params["conv1_w"], s, b, stride=2, pad=3, relu=True)
    x = maxpool_3x3_s2(x)

    # residual stages (BasicBlock)
    for blocks in params["layers"]:
        for blk in blocks:
            identity = x
            s1, b1 = blk["bn1"]
            out = conv2d_bn(x, blk["conv1_w"], s1, b1, blk["stride"], pad=1, relu=True)
            s2, b2 = blk["bn2"]
            out = conv2d_bn(out, blk["conv2_w"], s2, b2, stride=1, pad=1, relu=False)
            if "down_w" in blk:
                sd, bd = blk["down_bn"]
                identity = conv2d_bn(
                    x, blk["down_w"], sd, bd, blk["stride"], pad=0, relu=False
                )
            x = add_relu(out, identity)

    feat = global_avg_pool(x)  # [N, 512] f32
    # network.fc == Identity; dropout(p=hparams['resnet_dropout']=0.0) == identity.
    # TODO(synk): stochastic dropout for p>0 in training mode not implemented.
    return feat


# ----------------------------------------------------------------------------
if __name__ == "__main__":
    key = jax.random.PRNGKey(0)
    k_x, k_p = jax.random.split(key)

    N, NC, H, W = 2, 4, 16, 16  # input_shape = (4, 16, 16), nc != 3 path
    x = jax.random.normal(k_x, (N, NC, H, W), jnp.float32)

    params = make_resnet18_params(k_p, nc=NC)
    features = resnet_forward(x, params)
    features = jax.block_until_ready(features)

    assert features.shape == (N, 512), features.shape
    assert features.dtype == jnp.float32
    print("KERNEL_OK")
</pallas_src>

<mosaic_0001>
module attributes {stable_mosaic.version = 11 : i64} {
  func.func @_mm_bias_kernel(%arg0: i32, %arg1: memref<128x196xbf16, #tpu.memory_space<vmem>>, %arg2: memref<196x64xbf16, #tpu.memory_space<vmem>>, %arg3: memref<1x64xf32, #tpu.memory_space<vmem>>, %arg4: memref<128x64xbf16, #tpu.memory_space<vmem>>) attributes {dimension_semantics = [#tpu.dimension_semantics<parallel>], iteration_bounds = array<i64: 1>, scalar_prefetch = 0 : i64, scratch_operands = 0 : i64, tpu.core_type = #tpu.core_type<tc>, window_params = [{transform_indices = @transform_0, window_bounds = array<i64: 128, 196>}, {pipeline_mode = #tpu.pipeline_mode<synchronous>, transform_indices = @transform_1, window_bounds = array<i64: 196, 64>}, {pipeline_mode = #tpu.pipeline_mode<synchronous>, transform_indices = @transform_2, window_bounds = array<i64: 1, 64>}, {transform_indices = @transform_3, window_bounds = array<i64: 128, 64>}]} {
    %c0 = arith.constant 0 : index
    %c0_0 = arith.constant 0 : index
    %0 = vector.load %arg1[%c0, %c0_0] : memref<128x196xbf16, #tpu.memory_space<vmem>>, vector<128x196xbf16>
    %c0_1 = arith.constant 0 : index
    %c0_2 = arith.constant 0 : index
    %1 = vector.load %arg2[%c0_1, %c0_2] : memref<196x64xbf16, #tpu.memory_space<vmem>>, vector<196x64xbf16>
    %cst = arith.constant dense<0.000000e+00> : vector<128x64xf32>
    %2 = tpu.matmul %0, %1, %cst {dimension_numbers = #tpu.dot_dimension_numbers<[1], [0], [0], [1], [0, 0, 1, 1], [], []>} : vector<128x196xbf16>, vector<196x64xbf16>, vector<128x64xf32> -> vector<128x64xf32>
    %c0_3 = arith.constant 0 : index
    %c0_4 = arith.constant 0 : index
    %3 = vector.load %arg3[%c0_3, %c0_4] : memref<1x64xf32, #tpu.memory_space<vmem>>, vector<1x64xf32>
    %4 = vector.broadcast %3 : vector<1x64xf32> to vector<128x64xf32>
    %5 = arith.addf %2, %4 : vector<128x64xf32>
    %cst_5 = arith.constant 0.000000e+00 : f32
    %6 = vector.broadcast %cst_5 : f32 to vector<128x64xf32>
    %7 = arith.maximumf %5, %6 : vector<128x64xf32>
    %8 = arith.truncf %7 : vector<128x64xf32> to vector<128x64xbf16>
    %c0_6 = arith.constant 0 : index
    %c0_7 = arith.constant 0 : index
    %9 = vector.load %arg4[%c0_6, %c0_7] : memref<128x64xbf16, #tpu.memory_space<vmem>>, vector<128x64xbf16>
    tpu.vector_store %arg4[%c0_6, %c0_7], %8 {strides = array<i32>} : memref<128x64xbf16, #tpu.memory_space<vmem>>, vector<128x64xbf16>,
    return
  }
  func.func @transform_0(%arg0: i32) -> (i32, i32) {
    %c0_i32 = arith.constant 0 : i32
    %c0_i32_0 = arith.constant 0 : i32
    return %arg0, %c0_i32 : i32, i32
  }
  func.func @transform_1(%arg0: i32) -> (i32, i32) {
    %c0_i32 = arith.constant 0 : i32
    %c0_i32_0 = arith.constant 0 : i32
    %c0_i32_1 = arith.constant 0 : i32
    return %c0_i32, %c0_i32_0 : i32, i32
  }
  func.func @transform_2(%arg0: i32) -> (i32, i32) {
    %c0_i32 = arith.constant 0 : i32
    %c0_i32_0 = arith.constant 0 : i32
    %c0_i32_1 = arith.constant 0 : i32
    return %c0_i32, %c0_i32_0 : i32, i32
  }
  func.func @transform_3(%arg0: i32) -> (i32, i32) {
    %c0_i32 = arith.constant 0 : i32
    %c0_i32_0 = arith.constant 0 : i32
    return %arg0, %c0_i32 : i32, i32
  }
}

</mosaic_0001>

<llo_original>
// kernel: tpu_custom_call.1
$region0: #{tpu_custom_call.1}
  #allocation0 [shape = 'u32[]', space=smem, size = 0x4, offset = 0x4, fixed_abs, tag = 'smem constant byte address 0x4 - core index']
  #allocation1 [shape = 'u32[144,128]{1,0:T(1,128)}', space=vmem, size = 0x12000, scoped, tag = 'internal scratch']
  %s0 = inlined_call_operand.vmem [shape: bf16[128,196], index: 0, kind: input, shape index: {}]
  %s1 = inlined_call_operand.vmem [shape: bf16[196,64], index: 1, kind: input, shape index: {}]
  %s2 = inlined_call_operand.vmem [shape: f32[1,64], index: 2, kind: input, shape index: {}]
  %s3 = inlined_call_operand.vmem [shape: bf16[128,64], index: 3, kind: output, shape index: {}]
  %s4 = sld [smem:[#allocation0]]
  $region22: #{tpu_custom_call.1} parent=0
    _
  %s6 = ssub.s32 1, %s4
  %s7 = scalar_select 0, %s6, %s4
  // Predicated region
  $region2: #{tpu_custom_call.1} parent=0 // pred_check
    _
  $region3: #{tpu_custom_call.1} parent=0 // pred_check_branch
    %9 = sbr.rel (0) target = $region5
  $region4: #{tpu_custom_call.1} parent=0 // pred_region
    _
  $region5: #{tpu_custom_call.1} parent=0 // pred_fallthru
    _
  // Predicated region
  $region6: #{tpu_custom_call.1} parent=0 // pred_check
    _
  $region7: #{tpu_custom_call.1} parent=0 // pred_check_branch
    %11 = sbr.rel (0) target = $region9
  $region8: #{tpu_custom_call.1} parent=0 // pred_region
    _
  $region9: #{tpu_custom_call.1} parent=0 // pred_fallthru
    _
  // Predicated region
  $region10: #{tpu_custom_call.1} parent=0 // pred_check
    _
  $region11: #{tpu_custom_call.1} parent=0 // pred_check_branch
    %13 = sbr.rel (0) target = $region13
  $region12: #{tpu_custom_call.1} parent=0 // pred_region
    _
  $region13: #{tpu_custom_call.1} parent=0 // pred_fallthru
    _
  %v15 = vld [vmem:[%s0] sm:$0xff]
  %v16 = vld [vmem:[%s0 + $0x8] sm:$0xff]
  %v17 = vld [vmem:[%s0 + $0x10] sm:$0xff]
  %v18 = vld [vmem:[%s0 + $0x18] sm:$0xff]
  %v19 = vld [vmem:[%s0 + $0x20] sm:$0xff]
  %v20 = vld [vmem:[%s0 + $0x28] sm:$0xff]
  %v21 = vld [vmem:[%s0 + $0x30] sm:$0xff]
  %v22 = vld [vmem:[%s0 + $0x38] sm:$0xff]
  %v23 = vld [vmem:[%s0 + $0x40] sm:$0xff]
  %v24 = vld [vmem:[%s0 + $0x48] sm:$0xff]
  %v25 = vld [vmem:[%s0 + $0x50] sm:$0xff]
  %v26 = vld [vmem:[%s0 + $0x58] sm:$0xff]
  %v27 = vld [vmem:[%s0 + $0x60] sm:$0xff]
  %v28 = vld [vmem:[%s0 + $0x68] sm:$0xff]
  %v29 = vld [vmem:[%s0 + $0x70] sm:$0xff]
  %v30 = vld [vmem:[%s0 + $0x78] sm:$0xff]
  %v31 = vld [vmem:[%s1] sm:$0xf]
  %v32 = vld [vmem:[%s1 + $0x4] sm:$0xf]
  %v33 = vld [vmem:[%s1 + $0x8] sm:$0xf]
  %v34 = vld [vmem:[%s1 + $0xc] sm:$0xf]
  %v35 = vld [vmem:[%s1 + $0x10] sm:$0xf]
  %v36 = vld [vmem:[%s1 + $0x14] sm:$0xf]
  %v37 = vld [vmem:[%s1 + $0x18] sm:$0xf]
  %v38 = vld [vmem:[%s1 + $0x1c] sm:$0xf]
  %v39 = vld [vmem:[%s1 + $0x20] sm:$0xf]
  %v40 = vld [vmem:[%s1 + $0x24] sm:$0xf]
  %v41 = vld [vmem:[%s1 + $0x28] sm:$0xf]
  %v42 = vld [vmem:[%s1 + $0x2c] sm:$0xf]
  %v43 = vld [vmem:[%s1 + $0x30] sm:$0xf]
  %v44 = vld [vmem:[%s1 + $0x34] sm:$0xf]
  %v45 = vld [vmem:[%s1 + $0x38] sm:$0xf]
  %v46 = vld [vmem:[%s1 + $0x3c] sm:$0xf]
  %v47 = vld [vmem:[%s1 + $0x40] sm:$0xf]
  %v48 = vld [vmem:[%s1 + $0x44] sm:$0xf]
  %v49 = vld [vmem:[%s1 + $0x48] sm:$0xf]
  %v50 = vld [vmem:[%s1 + $0x4c] sm:$0xf]
  %v51 = vld [vmem:[%s1 + $0x50] sm:$0xf]
  %v52 = vld [vmem:[%s1 + $0x54] sm:$0xf]
  %v53 = vld [vmem:[%s1 + $0x58] sm:$0xf]
  %v54 = vld [vmem:[%s1 + $0x5c] sm:$0xf]
  %v55 = vld [vmem:[%s1 + $0x60] sm:$0x3]
  %v56 = vld [vmem:[%s2] sm:$0x1]
  %v58 = vlaneseq
  %v59 = vshrl.u32 %v58, 7
  %v60 = vsub.s32 0, %v59
  %v61 = vrot.slane %v56, %v60
  %v79 = vunpack.c.l.b16 %v15
  %v80 = vunpack.c.h.b16 %v15
  %v81 = vunpack.c.l.b16 %v16
  %v82 = vunpack.c.h.b16 %v16
  %v83 = vunpack.c.l.b16 %v17
  %v84 = vunpack.c.h.b16 %v17
  %v85 = vunpack.c.l.b16 %v18
  %v86 = vunpack.c.h.b16 %v18
  %v87 = vunpack.c.l.b16 %v19
  %v88 = vunpack.c.h.b16 %v19
  %v89 = vunpack.c.l.b16 %v20
  %v90 = vunpack.c.h.b16 %v20
  %v91 = vunpack.c.l.b16 %v21
  %v92 = vunpack.c.h.b16 %v21
  %v93 = vunpack.c.l.b16 %v22
  %v94 = vunpack.c.h.b16 %v22
  %v95 = vunpack.c.l.b16 %v23
  %v96 = vunpack.c.h.b16 %v23
  %v97 = vunpack.c.l.b16 %v24
  %v98 = vunpack.c.h.b16 %v24
  %v99 = vunpack.c.l.b16 %v25
  %v100 = vunpack.c.h.b16 %v25
  %v101 = vunpack.c.l.b16 %v26
  %v102 = vunpack.c.h.b16 %v26
  %v103 = vunpack.c.l.b16 %v27
  %v104 = vunpack.c.h.b16 %v27
  %v105 = vunpack.c.l.b16 %v28
  %v106 = vunpack.c.h.b16 %v28
  %v107 = vunpack.c.l.b16 %v29
  %v108 = vunpack.c.h.b16 %v29
  %v109 = vunpack.c.l.b16 %v30
  %v110 = vunpack.c.h.b16 %v30
  %v111 = vpack.c.b16 %v81, %v79
  %v112 = vpack.c.b16 %v82, %v80
  %v113 = vpack.c.b16 %v85, %v83
  %v114 = vpack.c.b16 %v86, %v84
  %v115 = vpack.c.b16 %v89, %v87
  %v116 = vpack.c.b16 %v90, %v88
  %v117 = vpack.c.b16 %v93, %v91
  %v118 = vpack.c.b16 %v94, %v92
  %v119 = vpack.c.b16 %v97, %v95
  %v120 = vpack.c.b16 %v98, %v96
  %v121 = vpack.c.b16 %v101, %v99
  %v122 = vpack.c.b16 %v102, %v100
  %v123 = vpack.c.b16 %v105, %v103
  %v124 = vpack.c.b16 %v106, %v104
  %v125 = vpack.c.b16 %v109, %v107
  %v126 = vpack.c.b16 %v110, %v108
  %v160 = vunpack.c.l.b16 %v31
  %v161 = vunpack.c.l.b16 %v32
  %v162 = vunpack.c.l.b16 %v33
  %v163 = vunpack.c.l.b16 %v34
  %v164 = vunpack.c.l.b16 %v35
  %v165 = vunpack.c.l.b16 %v36
  %v166 = vunpack.c.l.b16 %v37
  %v167 = vunpack.c.l.b16 %v38
  %v168 = vunpack.c.l.b16 %v39
  %v169 = vunpack.c.l.b16 %v40
  %v170 = vunpack.c.l.b16 %v41
  %v171 = vunpack.c.l.b16 %v42
  %v172 = vunpack.c.l.b16 %v43
  %v173 = vunpack.c.l.b16 %v44
  %v174 = vunpack.c.l.b16 %v45
  %v175 = vunpack.c.l.b16 %v46
  %v176 = vunpack.c.l.b16 %v47
  %v177 = vunpack.c.l.b16 %v48
  %v178 = vunpack.c.l.b16 %v49
  %v179 = vunpack.c.l.b16 %v50
  %v180 = vunpack.c.l.b16 %v51
  %v181 = vunpack.c.l.b16 %v52
  %v182 = vunpack.c.l.b16 %v53
  %v183 = vunpack.c.l.b16 %v54
  %v184 = vunpack.c.l.b16 %v55
  %v185 = vpack.c.b16 %v161, %v160
  %v186 = vpack.c.b16 %v163, %v162
  %v187 = vpack.c.b16 %v165, %v164
  %v188 = vpack.c.b16 %v167, %v166
  %v189 = vpack.c.b16 %v169, %v168
  %v190 = vpack.c.b16 %v171, %v170
  %v191 = vpack.c.b16 %v173, %v172
  %v192 = vpack.c.b16 %v175, %v174
  %v193 = vpack.c.b16 %v177, %v176
  %v194 = vpack.c.b16 %v179, %v178
  %v195 = vpack.c.b16 %v181, %v180
  %v196 = vpack.c.b16 %v183, %v182
  %v197 = vpack.c.b16 %v184, %v184
  %vm210 = vcmask 556032
  %v212 = vsel %vm210, %v112, 0
  %v215 = vsel %vm210, %v114, 0
  %v218 = vsel %vm210, %v116, 0
  %v221 = vsel %vm210, %v118, 0
  %v224 = vsel %vm210, %v120, 0
  %v227 = vsel %vm210, %v122, 0
  %v230 = vsel %vm210, %v124, 0
  %v233 = vsel %vm210, %v126, 0
  %vm235 = vcmask 1041408
  %v237 = vsel %vm235, %v197, 0
  %239 = vmatprep.subr.bf16.mxu0 0
  %240 = vmatpush1.bf16.msra.mxu0 %v185
  %241 = vmatprep.subr.bf16.mxu0 0
  %242 = vmatpush1.bf16.msra.mxu0 %v186
  %243 = vmatprep.subr.bf16.mxu0 0
  %244 = vmatpush1.bf16.msra.mxu0 %v187
  %245 = vmatprep.subr.bf16.mxu0 0
  %246 = vmatpush1.bf16.msra.mxu0 %v188
  %247 = vmatprep.subr.bf16.mxu0 0
  %248 = vmatpush1.bf16.msra.mxu0 %v189
  %249 = vmatprep.subr.bf16.mxu0 0
  %250 = vmatpush1.bf16.msra.mxu0 %v190
  %251 = vmatprep.subr.bf16.mxu0 0
  %252 = vmatpush1.bf16.msra.mxu0 %v191
  %253 = vmatprep.subr.bf16.mxu0 0
  %254 = vmatpush1.bf16.msra.mxu0 %v192
  %255 = vmatprep.subr.bf16.mxu0 0
  %256 = vmatpush1.bf16.msra.mxu0 %v193
  %257 = vmatprep.subr.bf16.mxu0 0
  %258 = vmatpush1.bf16.msra.mxu0 %v194
  %259 = vmatprep.subr.bf16.mxu0 0
  %260 = vmatpush1.bf16.msra.mxu0 %v195
  %261 = vmatprep.subr.bf16.mxu0 0
  %262 = vmatpush1.bf16.msra.mxu0 %v196
  %263 = vmatprep.subr.bf16.mxu0 0
  %264 = vmatpush1.bf16.msra.mxu0 %v237
  %265 = vmatprep.subr.bf16.mxu0 0
  %266 = vmatpush1.bf16.msra.mxu0 0
  %267 = vmatprep.subr.bf16.mxu0 0
  %268 = vmatpush1.bf16.msra.mxu0 0
  %269 = vmatprep.subr.bf16.mxu0 0
  %270 = vmatpush1.bf16.msra.mxu0 0
  %271 = vmatprep.mubr.bf16.mxu0 %v212
  %272 = vmatmul.mubr.bf16.gmra.mrb[0].mxu0 %v111
  %v273 = vpop.f32.mrb[0].mxu0
  %v274 = vadd.f32 %v61, %v273
  %v275 = vpop.f32.mrb[0].mxu0
  %v276 = vpop.f32.mrb[0].mxu0
  %v277 = vadd.f32 %v61, %v276
  %v278 = vpop.f32.mrb[0].mxu0
  %279 = vmatprep.mubr.bf16.mxu0 %v215
  %280 = vmatmul.mubr.bf16.gmra.mrb[0].mxu0 %v113
  %v281 = vpop.f32.mrb[0].mxu0
  %v282 = vadd.f32 %v61, %v281
  %v283 = vpop.f32.mrb[0].mxu0
  %v284 = vpop.f32.mrb[0].mxu0
  %v285 = vadd.f32 %v61, %v284
  %v286 = vpop.f32.mrb[0].mxu0
  %287 = vmatprep.mubr.bf16.mxu0 %v218
  %288 = vmatmul.mubr.bf16.gmra.mrb[0].mxu0 %v115
  %v289 = vpop.f32.mrb[0].mxu0
  %v290 = vadd.f32 %v61, %v289
  %v291 = vpop.f32.mrb[0].mxu0
  %v292 = vpop.f32.mrb[0].mxu0
  %v293 = vadd.f32 %v61, %v292
  %v294 = vpop.f32.mrb[0].mxu0
  %295 = vmatprep.mubr.bf16.mxu0 %v221
  %296 = vmatmul.mubr.bf16.gmra.mrb[0].mxu0 %v117
  %v297 = vpop.f32.mrb[0].mxu0
  %v298 = vadd.f32 %v61, %v297
  %v299 = vpop.f32.mrb[0].mxu0
  %v300 = vpop.f32.mrb[0].mxu0
  %v301 = vadd.f32 %v61, %v300
  %v302 = vpop.f32.mrb[0].mxu0
  %303 = vmatprep.mubr.bf16.mxu0 %v224
  %304 = vmatmul.mubr.bf16.gmra.mrb[0].mxu0 %v119
  %v305 = vpop.f32.mrb[0].mxu0
  %v306 = vadd.f32 %v61, %v305
  %v307 = vpop.f32.mrb[0].mxu0
  %v308 = vpop.f32.mrb[0].mxu0
  %v309 = vadd.f32 %v61, %v308
  %v310 = vpop.f32.mrb[0].mxu0
  %311 = vmatprep.mubr.bf16.mxu0 %v227
  %312 = vmatmul.mubr.bf16.gmra.mrb[0].mxu0 %v121
  %v313 = vpop.f32.mrb[0].mxu0
  %v314 = vadd.f32 %v61, %v313
  %v315 = vpop.f32.mrb[0].mxu0
  %v316 = vpop.f32.mrb[0].mxu0
  %v317 = vadd.f32 %v61, %v316
  %v318 = vpop.f32.mrb[0].mxu0
  %319 = vmatprep.mubr.bf16.mxu0 %v230
  %320 = vmatmul.mubr.bf16.gmra.mrb[0].mxu0 %v123
  %v321 = vpop.f32.mrb[0].mxu0
  %v322 = vadd.f32 %v61, %v321
  %v323 = vpop.f32.mrb[0].mxu0
  %v324 = vpop.f32.mrb[0].mxu0
  %v325 = vadd.f32 %v61, %v324
  %v326 = vpop.f32.mrb[0].mxu0
  %327 = vmatprep.mubr.bf16.mxu0 %v233
  %328 = vmatmul.mubr.bf16.gmra.mrb[0].mxu0 %v125
  %v329 = vpop.f32.mrb[0].mxu0
  %v330 = vadd.f32 %v61, %v329
  %v331 = vpop.f32.mrb[0].mxu0
  %v332 = vpop.f32.mrb[0].mxu0
  %v333 = vadd.f32 %v61, %v332
  %v334 = vpop.f32.mrb[0].mxu0
  %335 = vdwg.mxu0
  %v336 = vmax.f32 %v274, 0.0
  %v337 = vmax.f32 %v277, 0.0
  %v338 = vmax.f32 %v282, 0.0
  %v339 = vmax.f32 %v285, 0.0
  %v340 = vmax.f32 %v290, 0.0
  %v341 = vmax.f32 %v293, 0.0
  %v342 = vmax.f32 %v298, 0.0
  %v343 = vmax.f32 %v301, 0.0
  %v344 = vmax.f32 %v306, 0.0
  %v345 = vmax.f32 %v309, 0.0
  %v346 = vmax.f32 %v314, 0.0
  %v347 = vmax.f32 %v317, 0.0
  %v348 = vmax.f32 %v322, 0.0
  %v349 = vmax.f32 %v325, 0.0
  %v350 = vmax.f32 %v330, 0.0
  %v351 = vmax.f32 %v333, 0.0
  %v352 = vpack.c.bf16 %v337, %v336
  %v353 = vpack.c.bf16 %v339, %v338
  %v354 = vpack.c.bf16 %v341, %v340
  %v355 = vpack.c.bf16 %v343, %v342
  %v356 = vpack.c.bf16 %v345, %v344
  %v357 = vpack.c.bf16 %v347, %v346
  %v358 = vpack.c.bf16 %v349, %v348
  %v359 = vpack.c.bf16 %v351, %v350
  %v368 = vunpack.c.l.b16 %v352
  %v369 = vunpack.c.h.b16 %v352
  %v370 = vunpack.c.l.b16 %v353
  %v371 = vunpack.c.h.b16 %v353
  %v372 = vunpack.c.l.b16 %v354
  %v373 = vunpack.c.h.b16 %v354
  %v374 = vunpack.c.l.b16 %v355
  %v375 = vunpack.c.h.b16 %v355
  %v376 = vunpack.c.l.b16 %v356
  %v377 = vunpack.c.h.b16 %v356
  %v378 = vunpack.c.l.b16 %v357
  %v379 = vunpack.c.h.b16 %v357
  %v380 = vunpack.c.l.b16 %v358
  %v381 = vunpack.c.h.b16 %v358
  %v382 = vunpack.c.l.b16 %v359
  %v383 = vunpack.c.h.b16 %v359
  %v384 = vpack.c.b16 %v368, %v368
  %v385 = vpack.c.b16 %v369, %v369
  %v386 = vpack.c.b16 %v370, %v370
  %v387 = vpack.c.b16 %v371, %v371
  %v388 = vpack.c.b16 %v372, %v372
  %v389 = vpack.c.b16 %v373, %v373
  %v390 = vpack.c.b16 %v374, %v374
  %v391 = vpack.c.b16 %v375, %v375
  %v392 = vpack.c.b16 %v376, %v376
  %v393 = vpack.c.b16 %v377, %v377
  %v394 = vpack.c.b16 %v378, %v378
  %v395 = vpack.c.b16 %v379, %v379
  %v396 = vpack.c.b16 %v380, %v380
  %v397 = vpack.c.b16 %v381, %v381
  %v398 = vpack.c.b16 %v382, %v382
  %v399 = vpack.c.b16 %v383, %v383
  %vm416 = vcmask 519168
  %417 = vst.msk [vmem:[%s3] sm:$0xf] %vm416, %v384
  %418 = vst.msk [vmem:[%s3 + $0x4] sm:$0xf] %vm416, %v385
  %419 = vst.msk [vmem:[%s3 + $0x8] sm:$0xf] %vm416, %v386
  %420 = vst.msk [vmem:[%s3 + $0xc] sm:$0xf] %vm416, %v387
  %421 = vst.msk [vmem:[%s3 + $0x10] sm:$0xf] %vm416, %v388
  %422 = vst.msk [vmem:[%s3 + $0x14] sm:$0xf] %vm416, %v389
  %423 = vst.msk [vmem:[%s3 + $0x18] sm:$0xf] %vm416, %v390
  %424 = vst.msk [vmem:[%s3 + $0x1c] sm:$0xf] %vm416, %v391
  %425 = vst.msk [vmem:[%s3 + $0x20] sm:$0xf] %vm416, %v392
  %426 = vst.msk [vmem:[%s3 + $0x24] sm:$0xf] %vm416, %v393
  %427 = vst.msk [vmem:[%s3 + $0x28] sm:$0xf] %vm416, %v394
  %428 = vst.msk [vmem:[%s3 + $0x2c] sm:$0xf] %vm416, %v395
  %429 = vst.msk [vmem:[%s3 + $0x30] sm:$0xf] %vm416, %v396
  %430 = vst.msk [vmem:[%s3 + $0x34] sm:$0xf] %vm416, %v397
  %431 = vst.msk [vmem:[%s3 + $0x38] sm:$0xf] %vm416, %v398
  %432 = vst.msk [vmem:[%s3 + $0x3c] sm:$0xf] %vm416, %v399
  // Predicated region
  $region14: #{tpu_custom_call.1} parent=0 // pred_check
    _
  $region15: #{tpu_custom_call.1} parent=0 // pred_check_branch
    %434 = sbr.rel (0) target = $region17
  $region16: #{tpu_custom_call.1} parent=0 // pred_region
    _
  $region17: #{tpu_custom_call.1} parent=0 // pred_fallthru
    _
  // Predicated region
  $region18: #{tpu_custom_call.1} parent=0 // pred_check
    _
  $region19: #{tpu_custom_call.1} parent=0 // pred_check_branch
    %436 = sbr.rel (0) target = $region21
  $region20: #{tpu_custom_call.1} parent=0 // pred_region
    _
  $region21: #{tpu_custom_call.1} parent=0 // pred_fallthru
    _

</llo_original>
